<compile_context>
chip_gen: v7x
topology: tpu7x:2x2x1
jax: 0.10.0
libtpu: 0.0.40
codegen_flags: <defaults>
</compile_context>

<pallas_src>
import functools

import jax
import jax.numpy as jnp
from jax.experimental import pallas as pl
from jax.experimental.pallas import tpu as pltpu

LEAKY_SLOPE = 0.01  # PyTorch nn.LeakyReLU default negative_slope


def _leaky_relu(x):
    return jnp.where(x > 0, x, LEAKY_SLOPE * x)


def _round_up(n, m):
    return ((n + m - 1) // m) * m


def mlp_kernel(x_ref, w1_ref, b1_ref, w2_ref, b2_ref, w3_ref, b3_ref, o_ref):
    # Layer 1: bf16 x @ bf16 w1 on the MXU, f32 accumulate. No explicit upcast of x:
    # the MXU takes bf16 natively and accumulates in f32.
    h1 = jnp.dot(x_ref[...], w1_ref[...], preferred_element_type=jnp.float32)
    h1 = _leaky_relu(h1 + b1_ref[...])          # bias + LeakyReLU in f32 (VPU)

    # Layer 2: downcast activations only at the MXU boundary.
    h2 = jnp.dot(h1.astype(jnp.bfloat16), w2_ref[...],
                 preferred_element_type=jnp.float32)
    h2 = _leaky_relu(h2 + b2_ref[...])

    # Layer 3 (32 -> 1): an N=1 MXU matmul would use 1/128 (1/256 on v6e/v7x) of the
    # result width; do it as a VPU multiply + cross-lane (XLU) reduction instead.
    # w3_ref is (1, 32) f32, b3_ref is (1, 1) f32.
    y = jnp.sum(h2 * w3_ref[...], axis=-1, keepdims=True) + b3_ref[...]
    o_ref[...] = y.astype(o_ref.dtype)


@functools.partial(jax.jit, static_argnames=("block_b",))
def mlp_forward(x, w1, b1, w2, b2, w3, b3, *, block_b=512):
    """x: (B, in_features) f32. Returns (B, 1) f32."""
    B, F = x.shape
    H1 = w1.shape[1]
    H2 = w2.shape[1]

    # Batch tile: multiple of 8 (sublane), capped at block_b; for tiny batches the tile
    # shrinks to a single step. 512-2048 row tiles sit near the HBM roofline; sweep
    # block_b per generation if needed (v7x: keep the VMEM footprint under ~32 MiB).
    tile = min(block_b, _round_up(B, 8))
    tile = _round_up(tile, 8)
    Bp = _round_up(B, tile)           # pad so the grid covers every row (correctness)
    grid_len = Bp // tile

    if Bp != B:
        x = jnp.pad(x, ((0, Bp - B), (0, 0)))   # padded rows are computed then dropped

    # Halve the dominant HBM stream: x (and the matmul weights) go in as bf16.
    # Keep x at 319 features in HBM (no host-side lane padding -> no extra DMA bytes).
    xb = x.astype(jnp.bfloat16)
    w1b = w1.astype(jnp.bfloat16)
    w2b = w2.astype(jnp.bfloat16)
    w3r = w3.reshape(1, H2).astype(jnp.float32)   # (32,1) -> (1,32), used on the VPU in f32
    b3r = b3.reshape(1, 1).astype(jnp.float32)

    # Weights/biases are tiny and have a constant index_map -> stay resident in VMEM.
    full = lambda shape: pl.BlockSpec(shape, lambda i: (0,) * len(shape))

    out = pl.pallas_call(
        mlp_kernel,
        out_shape=jax.ShapeDtypeStruct((Bp, 1), jnp.float32),
        grid_spec=pltpu.PrefetchScalarGridSpec(
            num_scalar_prefetch=0,
            grid=(grid_len,),
            in_specs=[
                # x tile: the only per-step DMA; default double-buffering overlaps it
                # with compute. If profiling shows exposed DMA, bump to
                # pipeline_mode=pl.Buffered(3) on this spec only.
                pl.BlockSpec((tile, F), lambda i: (i, 0)),
                full((F, H1)),
                full((1, H1)),
                full((H1, H2)),
                full((1, H2)),
                full((1, H2)),   # w3 row (1, 32)
                full((1, 1)),    # b3 scalar
            ],
            out_specs=pl.BlockSpec((tile, 1), lambda i: (i, 0)),
        ),
        compiler_params=pltpu.CompilerParams(
            # Parallel grid axis -> megacore sharding on v7x (2 TCs); no-op on v5e/v6e.
            dimension_semantics=("parallel",),
            # Explicit scoped-VMEM budget: safe on v5e (16 MiB default scoped),
            # v6e (128 MiB phys) and v7x (64 MiB phys); actual usage at tile=512 is ~2 MiB.
            vmem_limit_bytes=32 * 1024 * 1024,
        ),
    )(xb, w1b, b1, w2b, b2, w3r, b3r)

    return out[:B]


def init_params(key, in_features=319):
    """Deterministic init mirroring nn.Linear shapes (stored transposed: (in, out))."""
    ks = jax.random.split(key, 6)

    def linear(kw, kb, fan_in, fan_out):
        bound = 1.0 / jnp.sqrt(fan_in)
        w = jax.random.uniform(kw, (fan_in, fan_out), jnp.float32, -bound, bound)
        b = jax.random.uniform(kb, (1, fan_out), jnp.float32, -bound, bound)
        return w, b

    w1, b1 = linear(ks[0], ks[1], in_features, 64)
    w2, b2 = linear(ks[2], ks[3], 64, 32)
    w3, b3 = linear(ks[4], ks[5], 32, 1)
    return w1, b1, w2, b2, w3, b3


def mlp_reference(x, w1, b1, w2, b2, w3, b3):
    """Pure-JAX reference mirroring the kernel's bf16-input / f32-accumulate numerics."""
    h1 = _leaky_relu(
        jnp.dot(x.astype(jnp.bfloat16), w1.astype(jnp.bfloat16),
                preferred_element_type=jnp.float32) + b1)
    h2 = _leaky_relu(
        jnp.dot(h1.astype(jnp.bfloat16), w2.astype(jnp.bfloat16),
                preferred_element_type=jnp.float32) + b2)
    return h2 @ w3 + b3


if __name__ == "__main__":
    key = jax.random.PRNGKey(0)
    k_x, k_x2, k_p = jax.random.split(key, 3)

    in_features = 319
    params = init_params(k_p, in_features)

    # Small batch: single grid step (tile shrinks to the batch).
    batch = 8
    x = jax.random.normal(k_x, (batch, in_features), jnp.float32)
    out = jax.block_until_ready(mlp_forward(x, *params))
    ref = mlp_reference(x, *params)
    assert out.shape == (batch, 1), out.shape
    assert jnp.allclose(out, ref, atol=1e-2, rtol=1e-2), "mismatch vs reference (small batch)"

    # Larger, non-divisible batch: exercises padding + multi-step pipelined grid.
    batch2 = 1037
    x2 = jax.random.normal(k_x2, (batch2, in_features), jnp.float32)
    out2 = jax.block_until_ready(mlp_forward(x2, *params))
    ref2 = mlp_reference(x2, *params)
    assert out2.shape == (batch2, 1), out2.shape
    assert jnp.allclose(out2, ref2, atol=1e-2, rtol=1e-2), "mismatch vs reference (tiled batch)"

    print("KERNEL_OK")
</pallas_src>

<mosaic_0001>
module attributes {stable_mosaic.version = 11 : i64} {
  func.func @mlp_kernel(%arg0: i32, %arg1: memref<8x319xbf16, #tpu.memory_space<vmem>>, %arg2: memref<319x64xbf16, #tpu.memory_space<vmem>>, %arg3: memref<1x64xf32, #tpu.memory_space<vmem>>, %arg4: memref<64x32xbf16, #tpu.memory_space<vmem>>, %arg5: memref<1x32xf32, #tpu.memory_space<vmem>>, %arg6: memref<1x32xf32, #tpu.memory_space<vmem>>, %arg7: memref<1x1xf32, #tpu.memory_space<vmem>>, %arg8: memref<8x1xf32, #tpu.memory_space<vmem>>) attributes {dimension_semantics = [#tpu.dimension_semantics<parallel>], iteration_bounds = array<i64: 1>, scalar_prefetch = 0 : i64, scratch_operands = 0 : i64, tpu.core_type = #tpu.core_type<tc>, window_params = [{transform_indices = @transform_0, window_bounds = array<i64: 8, 319>}, {pipeline_mode = #tpu.pipeline_mode<synchronous>, transform_indices = @transform_1, window_bounds = array<i64: 319, 64>}, {pipeline_mode = #tpu.pipeline_mode<synchronous>, transform_indices = @transform_2, window_bounds = array<i64: 1, 64>}, {pipeline_mode = #tpu.pipeline_mode<synchronous>, transform_indices = @transform_3, window_bounds = array<i64: 64, 32>}, {pipeline_mode = #tpu.pipeline_mode<synchronous>, transform_indices = @transform_4, window_bounds = array<i64: 1, 32>}, {pipeline_mode = #tpu.pipeline_mode<synchronous>, transform_indices = @transform_5, window_bounds = array<i64: 1, 32>}, {pipeline_mode = #tpu.pipeline_mode<synchronous>, transform_indices = @transform_6, window_bounds = array<i64: 1, 1>}, {transform_indices = @transform_7, window_bounds = array<i64: 8, 1>}]} {
    %c0 = arith.constant 0 : index
    %c0_0 = arith.constant 0 : index
    %0 = vector.load %arg1[%c0, %c0_0] : memref<8x319xbf16, #tpu.memory_space<vmem>>, vector<8x319xbf16>
    %c0_1 = arith.constant 0 : index
    %c0_2 = arith.constant 0 : index
    %1 = vector.load %arg2[%c0_1, %c0_2] : memref<319x64xbf16, #tpu.memory_space<vmem>>, vector<319x64xbf16>
    %cst = arith.constant dense<0.000000e+00> : vector<8x64xf32>
    %2 = tpu.matmul %0, %1, %cst {dimension_numbers = #tpu.dot_dimension_numbers<[1], [0], [0], [1], [0, 0, 1, 1], [], []>} : vector<8x319xbf16>, vector<319x64xbf16>, vector<8x64xf32> -> vector<8x64xf32>
    %c0_3 = arith.constant 0 : index
    %c0_4 = arith.constant 0 : index
    %3 = vector.load %arg3[%c0_3, %c0_4] : memref<1x64xf32, #tpu.memory_space<vmem>>, vector<1x64xf32>
    %4 = vector.broadcast %3 : vector<1x64xf32> to vector<8x64xf32>
    %5 = arith.addf %2, %4 : vector<8x64xf32>
    %cst_5 = arith.constant 0.000000e+00 : f32
    %6 = vector.broadcast %cst_5 : f32 to vector<8x64xf32>
    %7 = arith.cmpf ogt, %5, %6 : vector<8x64xf32>
    %cst_6 = arith.constant 0.00999999977 : f32
    %8 = vector.broadcast %cst_6 : f32 to vector<8x64xf32>
    %9 = arith.mulf %8, %5 : vector<8x64xf32>
    %10 = arith.select %7, %5, %9 : vector<8x64xi1>, vector<8x64xf32>
    %11 = arith.truncf %10 : vector<8x64xf32> to vector<8x64xbf16>
    %c0_7 = arith.constant 0 : index
    %c0_8 = arith.constant 0 : index
    %12 = vector.load %arg4[%c0_7, %c0_8] : memref<64x32xbf16, #tpu.memory_space<vmem>>, vector<64x32xbf16>
    %cst_9 = arith.constant dense<0.000000e+00> : vector<8x32xf32>
    %13 = tpu.matmul %11, %12, %cst_9 {dimension_numbers = #tpu.dot_dimension_numbers<[1], [0], [0], [1], [0, 0, 1, 1], [], []>} : vector<8x64xbf16>, vector<64x32xbf16>, vector<8x32xf32> -> vector<8x32xf32>
    %c0_10 = arith.constant 0 : index
    %c0_11 = arith.constant 0 : index
    %14 = vector.load %arg5[%c0_10, %c0_11] : memref<1x32xf32, #tpu.memory_space<vmem>>, vector<1x32xf32>
    %15 = vector.broadcast %14 : vector<1x32xf32> to vector<8x32xf32>
    %16 = arith.addf %13, %15 : vector<8x32xf32>
    %cst_12 = arith.constant 0.000000e+00 : f32
    %17 = vector.broadcast %cst_12 : f32 to vector<8x32xf32>
    %18 = arith.cmpf ogt, %16, %17 : vector<8x32xf32>
    %cst_13 = arith.constant 0.00999999977 : f32
    %19 = vector.broadcast %cst_13 : f32 to vector<8x32xf32>
    %20 = arith.mulf %19, %16 : vector<8x32xf32>
    %21 = arith.select %18, %16, %20 : vector<8x32xi1>, vector<8x32xf32>
    %c0_14 = arith.constant 0 : index
    %c0_15 = arith.constant 0 : index
    %22 = vector.load %arg6[%c0_14, %c0_15] : memref<1x32xf32, #tpu.memory_space<vmem>>, vector<1x32xf32>
    %23 = vector.broadcast %22 : vector<1x32xf32> to vector<8x32xf32>
    %24 = arith.mulf %21, %23 : vector<8x32xf32>
    %cst_16 = arith.constant dense<0.000000e+00> : vector<8xf32>
    %25 = vector.multi_reduction <add>, %24, %cst_16 [1] : vector<8x32xf32> to vector<8xf32>
    %26 = vector.shape_cast %25 : vector<8xf32> to vector<8x1xf32>
    %c0_17 = arith.constant 0 : index
    %c0_18 = arith.constant 0 : index
    %27 = vector.load %arg7[%c0_17, %c0_18] : memref<1x1xf32, #tpu.memory_space<vmem>>, vector<1x1xf32>
    %28 = vector.broadcast %27 : vector<1x1xf32> to vector<8x1xf32>
    %29 = arith.addf %26, %28 : vector<8x1xf32>
    %c0_19 = arith.constant 0 : index
    %c0_20 = arith.constant 0 : index
    %30 = vector.load %arg8[%c0_19, %c0_20] : memref<8x1xf32, #tpu.memory_space<vmem>>, vector<8x1xf32>
    tpu.vector_store %arg8[%c0_19, %c0_20], %29 {strides = array<i32>} : memref<8x1xf32, #tpu.memory_space<vmem>>, vector<8x1xf32>,
    return
  }
  func.func @transform_0(%arg0: i32) -> (i32, i32) {
    %c0_i32 = arith.constant 0 : i32
    %c0_i32_0 = arith.constant 0 : i32
    return %arg0, %c0_i32 : i32, i32
  }
  func.func @transform_1(%arg0: i32) -> (i32, i32) {
    %c0_i32 = arith.constant 0 : i32
    %c0_i32_0 = arith.constant 0 : i32
    %c0_i32_1 = arith.constant 0 : i32
    return %c0_i32, %c0_i32_0 : i32, i32
  }
  func.func @transform_2(%arg0: i32) -> (i32, i32) {
    %c0_i32 = arith.constant 0 : i32
    %c0_i32_0 = arith.constant 0 : i32
    %c0_i32_1 = arith.constant 0 : i32
    return %c0_i32, %c0_i32_0 : i32, i32
  }
  func.func @transform_3(%arg0: i32) -> (i32, i32) {
    %c0_i32 = arith.constant 0 : i32
    %c0_i32_0 = arith.constant 0 : i32
    %c0_i32_1 = arith.constant 0 : i32
    return %c0_i32, %c0_i32_0 : i32, i32
  }
  func.func @transform_4(%arg0: i32) -> (i32, i32) {
    %c0_i32 = arith.constant 0 : i32
    %c0_i32_0 = arith.constant 0 : i32
    %c0_i32_1 = arith.constant 0 : i32
    return %c0_i32, %c0_i32_0 : i32, i32
  }
  func.func @transform_5(%arg0: i32) -> (i32, i32) {
    %c0_i32 = arith.constant 0 : i32
    %c0_i32_0 = arith.constant 0 : i32
    %c0_i32_1 = arith.constant 0 : i32
    return %c0_i32, %c0_i32_0 : i32, i32
  }
  func.func @transform_6(%arg0: i32) -> (i32, i32) {
    %c0_i32 = arith.constant 0 : i32
    %c0_i32_0 = arith.constant 0 : i32
    %c0_i32_1 = arith.constant 0 : i32
    return %c0_i32, %c0_i32_0 : i32, i32
  }
  func.func @transform_7(%arg0: i32) -> (i32, i32) {
    %c0_i32 = arith.constant 0 : i32
    %c0_i32_0 = arith.constant 0 : i32
    return %arg0, %c0_i32 : i32, i32
  }
}

</mosaic_0001>

<llo_original>
// kernel: mlp_forward.1
$region0: #{mlp_forward.1}
  #allocation0 [shape = 'u32[]', space=smem, size = 0x4, offset = 0x4, fixed_abs, tag = 'smem constant byte address 0x4 - core index']
  #allocation1 [shape = 'u32[144,128]{1,0:T(1,128)}', space=vmem, size = 0x12000, scoped, tag = 'internal scratch']
  #allocation2 [shape = 'f32[1,1]{1,0:T(1,128)S(1)}', space=vmem, size = 0x200, scoped, tag = 'scoped memory for mlp_forward.1']
  %s0 = inlined_call_operand.vmem [shape: bf16[8,319], index: 0, kind: input, shape index: {}]
  %s1 = inlined_call_operand.vmem [shape: bf16[319,64], index: 1, kind: input, shape index: {}]
  %s2 = inlined_call_operand.vmem [shape: f32[1,64], index: 2, kind: input, shape index: {}]
  %s3 = inlined_call_operand.vmem [shape: bf16[64,32], index: 3, kind: input, shape index: {}]
  %s4 = inlined_call_operand.vmem [shape: f32[1,32], index: 4, kind: input, shape index: {}]
  %s5 = inlined_call_operand.vmem [shape: f32[1,32], index: 5, kind: input, shape index: {}]
  %s6 = inlined_call_operand.<no memory space> [shape: f32[1,1], index: 6, kind: input, shape index: {}]
  %s7 = inlined_call_operand.vmem [shape: f32[8,1], index: 7, kind: output, shape index: {}]
  %s8 = sld [smem:[#allocation0]]
  $region38: #{mlp_forward.1} parent=0
    _
  %s10 = ssub.s32 1, %s8
  %s11 = scalar_select 0, %s10, %s8
  %v12 = vstv %s6
  %13 = vst [vmem:[#allocation2] sm:$0x1] %v12
  // Predicated region
  $region2: #{mlp_forward.1} parent=0 // pred_check
    _
  $region3: #{mlp_forward.1} parent=0 // pred_check_branch
    %15 = sbr.rel (0) target = $region5
  $region4: #{mlp_forward.1} parent=0 // pred_region
    _
  $region5: #{mlp_forward.1} parent=0 // pred_fallthru
    _
  // Predicated region
  $region6: #{mlp_forward.1} parent=0 // pred_check
    _
  $region7: #{mlp_forward.1} parent=0 // pred_check_branch
    %17 = sbr.rel (0) target = $region9
  $region8: #{mlp_forward.1} parent=0 // pred_region
    _
  $region9: #{mlp_forward.1} parent=0 // pred_fallthru
    _
  // Predicated region
  $region10: #{mlp_forward.1} parent=0 // pred_check
    _
  $region11: #{mlp_forward.1} parent=0 // pred_check_branch
    %19 = sbr.rel (0) target = $region13
  $region12: #{mlp_forward.1} parent=0 // pred_region
    _
  $region13: #{mlp_forward.1} parent=0 // pred_fallthru
    _
  // Predicated region
  $region14: #{mlp_forward.1} parent=0 // pred_check
    _
  $region15: #{mlp_forward.1} parent=0 // pred_check_branch
    %21 = sbr.rel (0) target = $region17
  $region16: #{mlp_forward.1} parent=0 // pred_region
    _
  $region17: #{mlp_forward.1} parent=0 // pred_fallthru
    _
  // Predicated region
  $region18: #{mlp_forward.1} parent=0 // pred_check
    _
  $region19: #{mlp_forward.1} parent=0 // pred_check_branch
    %23 = sbr.rel (0) target = $region21
  $region20: #{mlp_forward.1} parent=0 // pred_region
    _
  $region21: #{mlp_forward.1} parent=0 // pred_fallthru
    _
  // Predicated region
  $region22: #{mlp_forward.1} parent=0 // pred_check
    _
  $region23: #{mlp_forward.1} parent=0 // pred_check_branch
    %25 = sbr.rel (0) target = $region25
  $region24: #{mlp_forward.1} parent=0 // pred_region
    _
  $region25: #{mlp_forward.1} parent=0 // pred_fallthru
    _
  // Predicated region
  $region26: #{mlp_forward.1} parent=0 // pred_check
    _
  $region27: #{mlp_forward.1} parent=0 // pred_check_branch
    %27 = sbr.rel (0) target = $region29
  $region28: #{mlp_forward.1} parent=0 // pred_region
    _
  $region29: #{mlp_forward.1} parent=0 // pred_fallthru
    _
  %v29 = vld [vmem:[%s0] sm:$0xff]
  %v30 = vld [vmem:[%s0 + $0x8] sm:$0xf]
  %v31 = vld [vmem:[%s1] sm:$0xf]
  %v32 = vld [vmem:[%s1 + $0x4] sm:$0xf]
  %v33 = vld [vmem:[%s1 + $0x8] sm:$0xf]
  %v34 = vld [vmem:[%s1 + $0xc] sm:$0xf]
  %v35 = vld [vmem:[%s1 + $0x10] sm:$0xf]
  %v36 = vld [vmem:[%s1 + $0x14] sm:$0xf]
  %v37 = vld [vmem:[%s1 + $0x18] sm:$0xf]
  %v38 = vld [vmem:[%s1 + $0x1c] sm:$0xf]
  %v39 = vld [vmem:[%s1 + $0x20] sm:$0xf]
  %v40 = vld [vmem:[%s1 + $0x24] sm:$0xf]
  %v41 = vld [vmem:[%s1 + $0x28] sm:$0xf]
  %v42 = vld [vmem:[%s1 + $0x2c] sm:$0xf]
  %v43 = vld [vmem:[%s1 + $0x30] sm:$0xf]
  %v44 = vld [vmem:[%s1 + $0x34] sm:$0xf]
  %v45 = vld [vmem:[%s1 + $0x38] sm:$0xf]
  %v46 = vld [vmem:[%s1 + $0x3c] sm:$0xf]
  %v47 = vld [vmem:[%s1 + $0x40] sm:$0xf]
  %v48 = vld [vmem:[%s1 + $0x44] sm:$0xf]
  %v49 = vld [vmem:[%s1 + $0x48] sm:$0xf]
  %v50 = vld [vmem:[%s1 + $0x4c] sm:$0xf]
  %v51 = vld [vmem:[%s1 + $0x50] sm:$0xf]
  %v52 = vld [vmem:[%s1 + $0x54] sm:$0xf]
  %v53 = vld [vmem:[%s1 + $0x58] sm:$0xf]
  %v54 = vld [vmem:[%s1 + $0x5c] sm:$0xf]
  %v55 = vld [vmem:[%s1 + $0x60] sm:$0xf]
  %v56 = vld [vmem:[%s1 + $0x64] sm:$0xf]
  %v57 = vld [vmem:[%s1 + $0x68] sm:$0xf]
  %v58 = vld [vmem:[%s1 + $0x6c] sm:$0xf]
  %v59 = vld [vmem:[%s1 + $0x70] sm:$0xf]
  %v60 = vld [vmem:[%s1 + $0x74] sm:$0xf]
  %v61 = vld [vmem:[%s1 + $0x78] sm:$0xf]
  %v62 = vld [vmem:[%s1 + $0x7c] sm:$0xf]
  %v63 = vld [vmem:[%s1 + $0x80] sm:$0xf]
  %v64 = vld [vmem:[%s1 + $0x84] sm:$0xf]
  %v65 = vld [vmem:[%s1 + $0x88] sm:$0xf]
  %v66 = vld [vmem:[%s1 + $0x8c] sm:$0xf]
  %v67 = vld [vmem:[%s1 + $0x90] sm:$0xf]
  %v68 = vld [vmem:[%s1 + $0x94] sm:$0xf]
  %v69 = vld [vmem:[%s1 + $0x98] sm:$0xf]
  %v70 = vld [vmem:[%s1 + $0x9c] sm:$0xf]
  %v71 = vld [vmem:[%s2] sm:$0x1]
  %v73 = vlaneseq
  %v74 = vshrl.u32 %v73, 7
  %v75 = vsub.s32 0, %v74
  %v76 = vrot.slane %v71, %v75
  %v80 = vunpack.c.l.b16 %v29
  %v81 = vunpack.c.h.b16 %v29
  %v82 = vunpack.c.l.b16 %v30
  %v83 = vpack.c.b16 %v80, %v80
  %v84 = vpack.c.b16 %v81, %v81
  %v85 = vpack.c.b16 %v82, %v82
  %v128 = vunpack.c.l.b16 %v31
  %v129 = vunpack.c.l.b16 %v32
  %v130 = vunpack.c.l.b16 %v33
  %v131 = vunpack.c.l.b16 %v34
  %v132 = vunpack.c.l.b16 %v35
  %v133 = vunpack.c.l.b16 %v36
  %v134 = vunpack.c.l.b16 %v37
  %v135 = vunpack.c.l.b16 %v38
  %v136 = vunpack.c.l.b16 %v39
  %v137 = vunpack.c.l.b16 %v40
  %v138 = vunpack.c.l.b16 %v41
  %v139 = vunpack.c.l.b16 %v42
  %v140 = vunpack.c.l.b16 %v43
  %v141 = vunpack.c.l.b16 %v44
  %v142 = vunpack.c.l.b16 %v45
  %v143 = vunpack.c.l.b16 %v46
  %v144 = vunpack.c.l.b16 %v47
  %v145 = vunpack.c.l.b16 %v48
  %v146 = vunpack.c.l.b16 %v49
  %v147 = vunpack.c.l.b16 %v50
  %v148 = vunpack.c.l.b16 %v51
  %v149 = vunpack.c.l.b16 %v52
  %v150 = vunpack.c.l.b16 %v53
  %v151 = vunpack.c.l.b16 %v54
  %v152 = vunpack.c.l.b16 %v55
  %v153 = vunpack.c.l.b16 %v56
  %v154 = vunpack.c.l.b16 %v57
  %v155 = vunpack.c.l.b16 %v58
  %v156 = vunpack.c.l.b16 %v59
  %v157 = vunpack.c.l.b16 %v60
  %v158 = vunpack.c.l.b16 %v61
  %v159 = vunpack.c.l.b16 %v62
  %v160 = vunpack.c.l.b16 %v63
  %v161 = vunpack.c.l.b16 %v64
  %v162 = vunpack.c.l.b16 %v65
  %v163 = vunpack.c.l.b16 %v66
  %v164 = vunpack.c.l.b16 %v67
  %v165 = vunpack.c.l.b16 %v68
  %v166 = vunpack.c.l.b16 %v69
  %v167 = vunpack.c.l.b16 %v70
  %v168 = vpack.c.b16 %v129, %v128
  %v169 = vpack.c.b16 %v131, %v130
  %v170 = vpack.c.b16 %v133, %v132
  %v171 = vpack.c.b16 %v135, %v134
  %v172 = vpack.c.b16 %v137, %v136
  %v173 = vpack.c.b16 %v139, %v138
  %v174 = vpack.c.b16 %v141, %v140
  %v175 = vpack.c.b16 %v143, %v142
  %v176 = vpack.c.b16 %v145, %v144
  %v177 = vpack.c.b16 %v147, %v146
  %v178 = vpack.c.b16 %v149, %v148
  %v179 = vpack.c.b16 %v151, %v150
  %v180 = vpack.c.b16 %v153, %v152
  %v181 = vpack.c.b16 %v155, %v154
  %v182 = vpack.c.b16 %v157, %v156
  %v183 = vpack.c.b16 %v159, %v158
  %v184 = vpack.c.b16 %v161, %v160
  %v185 = vpack.c.b16 %v163, %v162
  %v186 = vpack.c.b16 %v165, %v164
  %v187 = vpack.c.b16 %v167, %v166
  %vm207 = vcmask 515072
  %v209 = vsel %vm207, %v85, 0
  %vm211 = vcmask 1046528
  %vm212 = vcmask 1047552
  %v213 = vsel %vm211, 4294967295, 65535
  %v214 = vsel %vm212, %v213, 0
  %v216 = vand.u32 %v187, %v214
  %218 = vmatprep.subr.bf16.mxu0 0
  %219 = vmatpush1.bf16.msra.mxu0 %v168
  %220 = vmatprep.subr.bf16.mxu0 0
  %221 = vmatpush1.bf16.msra.mxu0 %v169
  %222 = vmatprep.subr.bf16.mxu0 0
  %223 = vmatpush1.bf16.msra.mxu0 %v170
  %224 = vmatprep.subr.bf16.mxu0 0
  %225 = vmatpush1.bf16.msra.mxu0 %v171
  %226 = vmatprep.subr.bf16.mxu0 0
  %227 = vmatpush1.bf16.msra.mxu0 %v172
  %228 = vmatprep.subr.bf16.mxu0 0
  %229 = vmatpush1.bf16.msra.mxu0 %v173
  %230 = vmatprep.subr.bf16.mxu0 0
  %231 = vmatpush1.bf16.msra.mxu0 %v174
  %232 = vmatprep.subr.bf16.mxu0 0
  %233 = vmatpush1.bf16.msra.mxu0 %v175
  %234 = vmatprep.subr.bf16.mxu0 0
  %235 = vmatpush1.bf16.msra.mxu0 %v176
  %236 = vmatprep.subr.bf16.mxu0 0
  %237 = vmatpush1.bf16.msra.mxu0 %v177
  %238 = vmatprep.subr.bf16.mxu0 0
  %239 = vmatpush1.bf16.msra.mxu0 %v178
  %240 = vmatprep.subr.bf16.mxu0 0
  %241 = vmatpush1.bf16.msra.mxu0 %v179
  %242 = vmatprep.subr.bf16.mxu0 0
  %243 = vmatpush1.bf16.msra.mxu0 %v180
  %244 = vmatprep.subr.bf16.mxu0 0
  %245 = vmatpush1.bf16.msra.mxu0 %v181
  %246 = vmatprep.subr.bf16.mxu0 0
  %247 = vmatpush1.bf16.msra.mxu0 %v182
  %248 = vmatprep.subr.bf16.mxu0 0
  %249 = vmatpush1.bf16.msra.mxu0 %v183
  %250 = vmatprep.mubr.bf16.mxu0 %v84
  %251 = vmatmul.mubr.bf16.gmra.mrb[0].mxu0 %v83
  %v252 = vpop.f32.mrb[0].mxu0
  %v253 = vadd.f32 %v76, %v252
  %v254 = vpop.f32.mrb[0].mxu0
  %v255 = vpop.f32.mrb[0].mxu0
  %v256 = vpop.f32.mrb[0].mxu0
  %257 = vdwg.mxu0
  %258 = vmatprep.subr.bf16.mxu0 0
  %259 = vmatpush1.bf16.msra.mxu0 %v184
  %260 = vmatprep.subr.bf16.mxu0 0
  %261 = vmatpush1.bf16.msra.mxu0 %v185
  %262 = vmatprep.subr.bf16.mxu0 0
  %263 = vmatpush1.bf16.msra.mxu0 %v186
  %264 = vmatprep.subr.bf16.mxu0 0
  %265 = vmatpush1.bf16.msra.mxu0 %v216
  %266 = vmatprep.subr.bf16.mxu0 0
  %267 = vmatpush1.bf16.msra.mxu0 0
  %268 = vmatprep.subr.bf16.mxu0 0
  %269 = vmatpush1.bf16.msra.mxu0 0
  %270 = vmatprep.subr.bf16.mxu0 0
  %271 = vmatpush1.bf16.msra.mxu0 0
  %272 = vmatprep.subr.bf16.mxu0 0
  %273 = vmatpush1.bf16.msra.mxu0 0
  %274 = vmatprep.subr.bf16.mxu0 0
  %275 = vmatpush1.bf16.msra.mxu0 0
  %276 = vmatprep.subr.bf16.mxu0 0
  %277 = vmatpush1.bf16.msra.mxu0 0
  %278 = vmatprep.subr.bf16.mxu0 0
  %279 = vmatpush1.bf16.msra.mxu0 0
  %280 = vmatprep.subr.bf16.mxu0 0
  %281 = vmatpush1.bf16.msra.mxu0 0
  %282 = vmatprep.subr.bf16.mxu0 0
  %283 = vmatpush1.bf16.msra.mxu0 0
  %284 = vmatprep.subr.bf16.mxu0 0
  %285 = vmatpush1.bf16.msra.mxu0 0
  %286 = vmatprep.subr.bf16.mxu0 0
  %287 = vmatpush1.bf16.msra.mxu0 0
  %288 = vmatprep.subr.bf16.mxu0 0
  %289 = vmatpush1.bf16.msra.mxu0 0
  %290 = vmatprep.mubr.bf16.mxu0 0
  %291 = vmatmul.mubr.bf16.gmra.mrb[0].mxu0 %v209
  %v292 = vpop.f32.mrb[0].mxu0
  %v293 = vadd.f32 %v253, %v292
  %v294 = vpop.f32.mrb[0].mxu0
  %v295 = vpop.f32.mrb[0].mxu0
  %v296 = vpop.f32.mrb[0].mxu0
  %297 = vdwg.mxu0
  %vm298 = vcmp.gt.f32.partialorder %v293, 0.0
  %v299 = vmul.f32 %v293, 0.01
  %v300 = vsel %vm298, %v293, %v299
  %v301 = vpack.c.bf16 %v300, %v300
  %v302 = vld [vmem:[%s3] sm:$0xf]
  %v303 = vld [vmem:[%s3 + $0x4] sm:$0xf]
  %v304 = vld [vmem:[%s3 + $0x8] sm:$0xf]
  %v305 = vld [vmem:[%s3 + $0xc] sm:$0xf]
  %v306 = vld [vmem:[%s3 + $0x10] sm:$0xf]
  %v307 = vld [vmem:[%s3 + $0x14] sm:$0xf]
  %v308 = vld [vmem:[%s3 + $0x18] sm:$0xf]
  %v309 = vld [vmem:[%s3 + $0x1c] sm:$0xf]
  %v310 = vld [vmem:[%s4] sm:$0x1]
  %v312 = vlaneseq
  %v313 = vshrl.u32 %v312, 7
  %v314 = vsub.s32 0, %v313
  %v315 = vrot.slane %v310, %v314
  %v325 = vunpack.c.l.b16 %v302
  %v326 = vunpack.c.l.b16 %v303
  %v327 = vunpack.c.l.b16 %v304
  %v328 = vunpack.c.l.b16 %v305
  %v329 = vunpack.c.l.b16 %v306
  %v330 = vunpack.c.l.b16 %v307
  %v331 = vunpack.c.l.b16 %v308
  %v332 = vunpack.c.l.b16 %v309
  %v333 = vpack.c.b16 %v326, %v325
  %v334 = vpack.c.b16 %v328, %v327
  %v335 = vpack.c.b16 %v330, %v329
  %v336 = vpack.c.b16 %v332, %v331
  %vm341 = vcmask 523264
  %v343 = vsel %vm341, %v301, 0
  %345 = vmatprep.subr.bf16.mxu0 0
  %346 = vmatpush1.bf16.msra.mxu0 %v333
  %347 = vmatprep.subr.bf16.mxu0 0
  %348 = vmatpush1.bf16.msra.mxu0 %v334
  %349 = vmatprep.subr.bf16.mxu0 0
  %350 = vmatpush1.bf16.msra.mxu0 %v335
  %351 = vmatprep.subr.bf16.mxu0 0
  %352 = vmatpush1.bf16.msra.mxu0 %v336
  %353 = vmatprep.subr.bf16.mxu0 0
  %354 = vmatpush1.bf16.msra.mxu0 0
  %355 = vmatprep.subr.bf16.mxu0 0
  %356 = vmatpush1.bf16.msra.mxu0 0
  %357 = vmatprep.subr.bf16.mxu0 0
  %358 = vmatpush1.bf16.msra.mxu0 0
  %359 = vmatprep.subr.bf16.mxu0 0
  %360 = vmatpush1.bf16.msra.mxu0 0
  %361 = vmatprep.subr.bf16.mxu0 0
  %362 = vmatpush1.bf16.msra.mxu0 0
  %363 = vmatprep.subr.bf16.mxu0 0
  %364 = vmatpush1.bf16.msra.mxu0 0
  %365 = vmatprep.subr.bf16.mxu0 0
  %366 = vmatpush1.bf16.msra.mxu0 0
  %367 = vmatprep.subr.bf16.mxu0 0
  %368 = vmatpush1.bf16.msra.mxu0 0
  %369 = vmatprep.subr.bf16.mxu0 0
  %370 = vmatpush1.bf16.msra.mxu0 0
  %371 = vmatprep.subr.bf16.mxu0 0
  %372 = vmatpush1.bf16.msra.mxu0 0
  %373 = vmatprep.subr.bf16.mxu0 0
  %374 = vmatpush1.bf16.msra.mxu0 0
  %375 = vmatprep.subr.bf16.mxu0 0
  %376 = vmatpush1.bf16.msra.mxu0 0
  %377 = vmatprep.mubr.bf16.mxu0 0
  %378 = vmatmul.mubr.bf16.gmra.mrb[0].mxu0 %v343
  %v379 = vpop.f32.mrb[0].mxu0
  %v380 = vadd.f32 %v315, %v379
  %v381 = vpop.f32.mrb[0].mxu0
  %v382 = vpop.f32.mrb[0].mxu0
  %v383 = vpop.f32.mrb[0].mxu0
  %384 = vdwg.mxu0
  %vm385 = vcmp.gt.f32.partialorder %v380, 0.0
  %v386 = vmul.f32 %v380, 0.01
  %v387 = vsel %vm385, %v380, %v386
  %v388 = vld [vmem:[%s5] sm:$0x1]
  %v390 = vlaneseq
  %v391 = vshrl.u32 %v390, 7
  %v392 = vsub.s32 0, %v391
  %v393 = vrot.slane %v388, %v392
  %v395 = vmul.f32 %v387, %v393
  %vm396 = vcmask 261120
  %v397 = vsel %vm396, %v395, 0.0
  %398 = vadd.xlane.f32.xlu0 %v397
  %v399 = vpop.xlane.xlu0 %398
  %v400 = vld [vmem:[#allocation2] sm:$0x1]
  %v402 = vlaneseq
  %v403 = vshrl.u32 %v402, 7
  %v404 = vsub.s32 0, %v403
  %v405 = vrot.slane %v400, %v404
  %v407 = vadd.f32 %v399, %v405
  %vm408 = vcmask 7168
  %409 = vst.msk [vmem:[%s7] sm:$0xff] %vm408, %v407
  // Predicated region
  $region30: #{mlp_forward.1} parent=0 // pred_check
    _
  $region31: #{mlp_forward.1} parent=0 // pred_check_branch
    %411 = sbr.rel (0) target = $region33
  $region32: #{mlp_forward.1} parent=0 // pred_region
    _
  $region33: #{mlp_forward.1} parent=0 // pred_fallthru
    _
  // Predicated region
  $region34: #{mlp_forward.1} parent=0 // pred_check
    _
  $region35: #{mlp_forward.1} parent=0 // pred_check_branch
    %413 = sbr.rel (0) target = $region37
  $region36: #{mlp_forward.1} parent=0 // pred_region
    _
  $region37: #{mlp_forward.1} parent=0 // pred_fallthru
    _

</llo_original>
